<compile_context>
chip_gen: v5e
topology: v5e:2x2
jax: 0.10.0
libtpu: 0.0.40
codegen_flags: <defaults>
</compile_context>

<pallas_src>
import jax
import jax.numpy as jnp
from jax.experimental import pallas as pl
from jax.experimental.pallas import tpu as pltpu

_VMEM_LIMIT_BYTES = 32 * 1024 * 1024   # scoped-VMEM ceiling safe on v5e/v6e/v7x
_VMEM_BUDGET_BYTES = 16 * 1024 * 1024  # working-set target (leave headroom)
_MAX_TILE_S = 16 * 1024                # lanes per tile; past ~1k lanes gains are tiny
_PAD_LOGIT = -1e9                      # sigmoid(pad)==0 and bce(pad, 0)==0 exactly


def _dice_bce_partial_kernel(x_ref, t_ref, inter_ref, denom_ref, bce_ref):
    """Reduce one (BC, tile_s) tile to (BC, 1) partial sums and accumulate."""
    s = pl.program_id(1)

    @pl.when(s == 0)
    def _():
        inter_ref[...] = jnp.zeros_like(inter_ref)
        denom_ref[...] = jnp.zeros_like(denom_ref)
        bce_ref[...] = jnp.zeros_like(bce_ref)

    x = x_ref[...].astype(jnp.float32)
    t = t_ref[...].astype(jnp.float32)

    # One exp + one log1p per element; the divide goes to the EUP (approx rcp).
    e = jnp.exp(-jnp.abs(x))                     # exp(-|x|)
    inv = pl.reciprocal(1.0 + e, approx=True)    # 1 / (1 + exp(-|x|))
    p = jnp.where(x >= 0, inv, e * inv)          # sigmoid(x)
    # BCE-with-logits: max(x,0) - x*t + log(1 + exp(-|x|))
    bce_el = jnp.maximum(x, 0.0) - x * t + jnp.log1p(e)

    # Per-tile lane reduction: cross-vreg VPU adds + one small XLU tail,
    # accumulated into tiny (BC, 1) blocks resident across the reduce axis.
    inter_ref[...] += jnp.sum(p * t, axis=-1, keepdims=True)
    denom_ref[...] += jnp.sum(p + t, axis=-1, keepdims=True)
    bce_ref[...] += jnp.sum(bce_el, axis=-1, keepdims=True)


def _pick_tile_s(s_half, bc, in_bytes):
    """Largest spatial tile (multiple of 128, dividing s_half) under the VMEM budget."""
    # Per lane column: double-buffered input streams + ~8 live f32 temporaries.
    per_lane = bc * (2 * in_bytes + 8 * 4)
    max_lanes = max(128, _VMEM_BUDGET_BYTES // per_lane)
    tile = min(s_half, _MAX_TILE_S, (max_lanes // 128) * 128)
    tile = max(tile, 128)
    while s_half % tile != 0:   # s_half is a multiple of 128, terminates at 128
        tile -= 128
    return tile


def dice_bce_loss(inputs, targets, class_weight=None, smooth=1.0):
    """inputs: (B, C, H, W) logits; targets: (B, C, H, W) in {0,1}. Scalar f32 loss."""
    # TODO(synk): nn.BCELoss per-element `weight` (bce_weight) and reduction != 'mean'
    # are not supported; only the module's defaults (weight=None, reduction='mean').
    B, C, H, W = inputs.shape
    S = H * W
    BC = B * C

    # Stream inputs in their native dtype (bf16 stays bf16 on the wire).
    x = inputs.reshape(BC, S)
    t = targets.reshape(BC, S)

    if class_weight is None:
        cw = jnp.ones((C,), jnp.float32)
    else:
        cw = jnp.asarray(class_weight, jnp.float32)

    # Split the spatial reduction into halves over a leading "parallel" grid
    # axis (feeds both v7x TensorCores even for tiny B*C; near-free on 1-TC).
    n_splits = 2 if S > 128 else 1
    s_pad = ((S + 128 * n_splits - 1) // (128 * n_splits)) * (128 * n_splits)
    if s_pad != S:
        # Padded logits are very negative, targets 0 -> p = 0 and bce = 0 exactly.
        x = jnp.pad(x, ((0, 0), (0, s_pad - S)), constant_values=_PAD_LOGIT)
        t = jnp.pad(t, ((0, 0), (0, s_pad - S)), constant_values=0)
    s_half = s_pad // n_splits

    in_bytes = x.dtype.itemsize + t.dtype.itemsize
    tile_s = _pick_tile_s(s_half, BC, in_bytes)
    blocks_per_half = s_half // tile_s

    in_block = pl.BlockSpec((BC, tile_s), lambda h, s: (0, h * blocks_per_half + s))
    out_block = pl.BlockSpec((None, BC, 1), lambda h, s: (h, 0, 0))
    partial_shape = jax.ShapeDtypeStruct((n_splits, BC, 1), jnp.float32)

    inter_p, denom_p, bce_p = pl.pallas_call(
        _dice_bce_partial_kernel,
        out_shape=(partial_shape, partial_shape, partial_shape),
        grid=(n_splits, blocks_per_half),
        in_specs=[in_block, in_block],
        out_specs=(out_block, out_block, out_block),
        compiler_params=pltpu.CompilerParams(
            dimension_semantics=("parallel", "arbitrary"),
            vmem_limit_bytes=_VMEM_LIMIT_BYTES,
        ),
    )(x, t)

    # Tiny JAX epilogue: combine the split halves, class weights, normalization.
    inter = jnp.sum(inter_p, axis=0).reshape(B, C)
    denom = jnp.sum(denom_p, axis=0).reshape(B, C)
    bce_rows = jnp.sum(bce_p, axis=0).reshape(B, C)

    dice_score = (2.0 * inter + smooth) / (denom + smooth)          # (B, C)
    dice_loss = 1.0 - jnp.mean(jnp.mean(dice_score, axis=0) * cw)
    bce = jnp.sum((jnp.mean(bce_rows, axis=0) / S) * cw)            # /S: original H*W
    return bce + dice_loss


def _reference(inputs, targets, class_weight=None, smooth=1.0):
    """Pure-JAX reference matching the PyTorch module semantics."""
    B, C, H, W = inputs.shape
    if class_weight is None:
        class_weight = jnp.ones((C,), jnp.float32)
    cw = jnp.asarray(class_weight, jnp.float32)
    p = jax.nn.sigmoid(inputs.astype(jnp.float32))
    t = targets.astype(jnp.float32)
    # BCE per channel (mean reduction, torch-style log clamp), weighted, summed.
    log_p = jnp.maximum(jnp.log(p), -100.0)
    log_1mp = jnp.maximum(jnp.log(1.0 - p), -100.0)
    bce_el = -(t * log_p + (1.0 - t) * log_1mp)
    bce_per_c = jnp.mean(bce_el, axis=(0, 2, 3))
    bce = jnp.sum(bce_per_c * cw)
    # Dice
    pf = p.reshape(B, C, -1)
    tf = t.reshape(B, C, -1)
    inter = jnp.sum(pf * tf, axis=2)
    denom = jnp.sum(pf + tf, axis=2)
    dice_score = (2.0 * inter + smooth) / (denom + smooth)
    dice_loss = 1.0 - jnp.mean(jnp.mean(dice_score, axis=0) * cw)
    return bce + dice_loss


if __name__ == "__main__":
    key = jax.random.PRNGKey(0)
    k1, k2 = jax.random.split(key)

    # Tolerance relaxed because the kernel uses the EUP approximate reciprocal
    # (~2^-12 relative error in sigmoid; affects the dice terms only).
    rtol = atol = 5e-3

    # Case 1: aligned f32, default class weights.
    B, C, H, W = 2, 4, 16, 16
    logits = jax.random.normal(k1, (B, C, H, W), dtype=jnp.float32)
    targets = (jax.random.uniform(k2, (B, C, H, W)) > 0.5).astype(jnp.float32)
    loss = jax.block_until_ready(dice_bce_loss(logits, targets))
    ref = jax.block_until_ready(_reference(logits, targets))
    assert jnp.allclose(loss, ref, rtol=rtol, atol=atol), (loss, ref)

    # Case 2: non-default class weights.
    cw = jnp.array([1.0, 2.0, 0.5, 1.5], jnp.float32)
    loss_w = jax.block_until_ready(dice_bce_loss(logits, targets, class_weight=cw))
    ref_w = jax.block_until_ready(_reference(logits, targets, class_weight=cw))
    assert jnp.allclose(loss_w, ref_w, rtol=rtol, atol=atol), (loss_w, ref_w)

    # Case 3: bf16 inputs stream as bf16 (no wrapper upcast).
    logits_bf = logits.astype(jnp.bfloat16)
    targets_bf = targets.astype(jnp.bfloat16)
    loss_bf = jax.block_until_ready(dice_bce_loss(logits_bf, targets_bf))
    ref_bf = jax.block_until_ready(_reference(logits_bf, targets_bf))
    assert jnp.allclose(loss_bf, ref_bf, rtol=rtol, atol=atol), (loss_bf, ref_bf)

    # Case 4: unaligned spatial size / odd BC exercises the pad-to-128 path.
    k3, k4 = jax.random.split(k2)
    B2, C2, H2, W2 = 2, 3, 10, 10
    logits2 = jax.random.normal(k3, (B2, C2, H2, W2), dtype=jnp.float32)
    targets2 = (jax.random.uniform(k4, (B2, C2, H2, W2)) > 0.5).astype(jnp.float32)
    loss2 = jax.block_until_ready(dice_bce_loss(logits2, targets2))
    ref2 = jax.block_until_ready(_reference(logits2, targets2))
    assert jnp.allclose(loss2, ref2, rtol=rtol, atol=atol), (loss2, ref2)

    print("KERNEL_OK")
</pallas_src>

<mosaic_0001>
module attributes {stable_mosaic.version = 11 : i64} {
  func.func @_dice_bce_partial_kernel(%arg0: i32, %arg1: i32, %arg2: memref<8x128xf32, #tpu.memory_space<vmem>>, %arg3: memref<8x128xf32, #tpu.memory_space<vmem>>, %arg4: memref<1x8x1xf32, #tpu.memory_space<vmem>>, %arg5: memref<1x8x1xf32, #tpu.memory_space<vmem>>, %arg6: memref<1x8x1xf32, #tpu.memory_space<vmem>>) attributes {dimension_semantics = [#tpu.dimension_semantics<parallel>, #tpu.dimension_semantics<arbitrary>], iteration_bounds = array<i64: 2, 1>, scalar_prefetch = 0 : i64, scratch_operands = 0 : i64, tpu.core_type = #tpu.core_type<tc>, window_params = [{transform_indices = @transform_0, window_bounds = array<i64: 8, 128>}, {transform_indices = @transform_1, window_bounds = array<i64: 8, 128>}, {transform_indices = @transform_2, window_bounds = array<i64: 1, 8, 1>}, {transform_indices = @transform_3, window_bounds = array<i64: 1, 8, 1>}, {transform_indices = @transform_4, window_bounds = array<i64: 1, 8, 1>}]} {
    %c0_i32 = arith.constant 0 : i32
    %0 = arith.cmpi eq, %arg1, %c0_i32 : i32
    %1 = arith.extui %0 : i1 to i32
    %c0_i32_0 = arith.constant 0 : i32
    %2 = arith.cmpi ne, %1, %c0_i32_0 : i32
    scf.if %2 {
      %cst_28 = arith.constant 0.000000e+00 : f32
      %48 = vector.broadcast %cst_28 : f32 to vector<8x1xf32>
      %c0_29 = arith.constant 0 : index
      %c0_30 = arith.constant 0 : index
      %c0_31 = arith.constant 0 : index
      %49 = vector.load %arg4[%c0_29, %c0_30, %c0_31] : memref<1x8x1xf32, #tpu.memory_space<vmem>>, vector<1x8x1xf32>
      %50 = vector.shape_cast %49 : vector<1x8x1xf32> to vector<8x1xf32>
      %51 = vector.shape_cast %48 : vector<8x1xf32> to vector<1x8x1xf32>
      tpu.vector_store %arg4[%c0_29, %c0_30, %c0_31], %51 {strides = array<i32>} : memref<1x8x1xf32, #tpu.memory_space<vmem>>, vector<1x8x1xf32>,
      %cst_32 = arith.constant 0.000000e+00 : f32
      %52 = vector.broadcast %cst_32 : f32 to vector<8x1xf32>
      %c0_33 = arith.constant 0 : index
      %c0_34 = arith.constant 0 : index
      %c0_35 = arith.constant 0 : index
      %53 = vector.load %arg5[%c0_33, %c0_34, %c0_35] : memref<1x8x1xf32, #tpu.memory_space<vmem>>, vector<1x8x1xf32>
      %54 = vector.shape_cast %53 : vector<1x8x1xf32> to vector<8x1xf32>
      %55 = vector.shape_cast %52 : vector<8x1xf32> to vector<1x8x1xf32>
      tpu.vector_store %arg5[%c0_33, %c0_34, %c0_35], %55 {strides = array<i32>} : memref<1x8x1xf32, #tpu.memory_space<vmem>>, vector<1x8x1xf32>,
      %cst_36 = arith.constant 0.000000e+00 : f32
      %56 = vector.broadcast %cst_36 : f32 to vector<8x1xf32>
      %c0_37 = arith.constant 0 : index
      %c0_38 = arith.constant 0 : index
      %c0_39 = arith.constant 0 : index
      %57 = vector.load %arg6[%c0_37, %c0_38, %c0_39] : memref<1x8x1xf32, #tpu.memory_space<vmem>>, vector<1x8x1xf32>
      %58 = vector.shape_cast %57 : vector<1x8x1xf32> to vector<8x1xf32>
      %59 = vector.shape_cast %56 : vector<8x1xf32> to vector<1x8x1xf32>
      tpu.vector_store %arg6[%c0_37, %c0_38, %c0_39], %59 {strides = array<i32>} : memref<1x8x1xf32, #tpu.memory_space<vmem>>, vector<1x8x1xf32>,
    } else {
    }
    %c0 = arith.constant 0 : index
    %c0_1 = arith.constant 0 : index
    %3 = vector.load %arg2[%c0, %c0_1] : memref<8x128xf32, #tpu.memory_space<vmem>>, vector<8x128xf32>
    %c0_2 = arith.constant 0 : index
    %c0_3 = arith.constant 0 : index
    %4 = vector.load %arg3[%c0_2, %c0_3] : memref<8x128xf32, #tpu.memory_space<vmem>>, vector<8x128xf32>
    %5 = math.absf %3 : vector<8x128xf32>
    %cst = arith.constant 0.000000e+00 : f32
    %6 = vector.broadcast %cst : f32 to vector<8x128xf32>
    %7 = arith.subf %6, %5 : vector<8x128xf32>
    %8 = math.exp %7 : vector<8x128xf32>
    %cst_4 = arith.constant 1.000000e+00 : f32
    %9 = vector.broadcast %cst_4 : f32 to vector<8x128xf32>
    %10 = arith.addf %9, %8 : vector<8x128xf32>
    %11 = tpu.reciprocal %10 {approx = true} : vector<8x128xf32> -> vector<8x128xf32>
    %cst_5 = arith.constant 0.000000e+00 : f32
    %12 = vector.broadcast %cst_5 : f32 to vector<8x128xf32>
    %13 = arith.cmpf oge, %3, %12 : vector<8x128xf32>
    %14 = arith.mulf %8, %11 : vector<8x128xf32>
    %15 = arith.select %13, %11, %14 : vector<8x128xi1>, vector<8x128xf32>
    %cst_6 = arith.constant 0.000000e+00 : f32
    %16 = vector.broadcast %cst_6 : f32 to vector<8x128xf32>
    %17 = arith.maximumf %3, %16 : vector<8x128xf32>
    %18 = arith.mulf %3, %4 : vector<8x128xf32>
    %19 = arith.subf %17, %18 : vector<8x128xf32>
    %20 = math.log1p %8 : vector<8x128xf32>
    %21 = arith.addf %19, %20 : vector<8x128xf32>
    %c0_7 = arith.constant 0 : index
    %c0_8 = arith.constant 0 : index
    %c0_9 = arith.constant 0 : index
    %22 = vector.load %arg4[%c0_7, %c0_8, %c0_9] : memref<1x8x1xf32, #tpu.memory_space<vmem>>, vector<1x8x1xf32>
    %23 = vector.shape_cast %22 : vector<1x8x1xf32> to vector<8x1xf32>
    %24 = arith.mulf %15, %4 : vector<8x128xf32>
    %cst_10 = arith.constant dense<0.000000e+00> : vector<8xf32>
    %25 = vector.multi_reduction <add>, %24, %cst_10 [1] : vector<8x128xf32> to vector<8xf32>
    %26 = vector.shape_cast %25 : vector<8xf32> to vector<8x1xf32>
    %27 = arith.addf %23, %26 : vector<8x1xf32>
    %c0_11 = arith.constant 0 : index
    %c0_12 = arith.constant 0 : index
    %c0_13 = arith.constant 0 : index
    %28 = vector.load %arg4[%c0_11, %c0_12, %c0_13] : memref<1x8x1xf32, #tpu.memory_space<vmem>>, vector<1x8x1xf32>
    %29 = vector.shape_cast %28 : vector<1x8x1xf32> to vector<8x1xf32>
    %30 = vector.shape_cast %27 : vector<8x1xf32> to vector<1x8x1xf32>
    tpu.vector_store %arg4[%c0_11, %c0_12, %c0_13], %30 {strides = array<i32>} : memref<1x8x1xf32, #tpu.memory_space<vmem>>, vector<1x8x1xf32>,
    %c0_14 = arith.constant 0 : index
    %c0_15 = arith.constant 0 : index
    %c0_16 = arith.constant 0 : index
    %31 = vector.load %arg5[%c0_14, %c0_15, %c0_16] : memref<1x8x1xf32, #tpu.memory_space<vmem>>, vector<1x8x1xf32>
    %32 = vector.shape_cast %31 : vector<1x8x1xf32> to vector<8x1xf32>
    %33 = arith.addf %15, %4 : vector<8x128xf32>
    %cst_17 = arith.constant dense<0.000000e+00> : vector<8xf32>
    %34 = vector.multi_reduction <add>, %33, %cst_17 [1] : vector<8x128xf32> to vector<8xf32>
    %35 = vector.shape_cast %34 : vector<8xf32> to vector<8x1xf32>
    %36 = arith.addf %32, %35 : vector<8x1xf32>
    %c0_18 = arith.constant 0 : index
    %c0_19 = arith.constant 0 : index
    %c0_20 = arith.constant 0 : index
    %37 = vector.load %arg5[%c0_18, %c0_19, %c0_20] : memref<1x8x1xf32, #tpu.memory_space<vmem>>, vector<1x8x1xf32>
    %38 = vector.shape_cast %37 : vector<1x8x1xf32> to vector<8x1xf32>
    %39 = vector.shape_cast %36 : vector<8x1xf32> to vector<1x8x1xf32>
    tpu.vector_store %arg5[%c0_18, %c0_19, %c0_20], %39 {strides = array<i32>} : memref<1x8x1xf32, #tpu.memory_space<vmem>>, vector<1x8x1xf32>,
    %c0_21 = arith.constant 0 : index
    %c0_22 = arith.constant 0 : index
    %c0_23 = arith.constant 0 : index
    %40 = vector.load %arg6[%c0_21, %c0_22, %c0_23] : memref<1x8x1xf32, #tpu.memory_space<vmem>>, vector<1x8x1xf32>
    %41 = vector.shape_cast %40 : vector<1x8x1xf32> to vector<8x1xf32>
    %cst_24 = arith.constant dense<0.000000e+00> : vector<8xf32>
    %42 = vector.multi_reduction <add>, %21, %cst_24 [1] : vector<8x128xf32> to vector<8xf32>
    %43 = vector.shape_cast %42 : vector<8xf32> to vector<8x1xf32>
    %44 = arith.addf %41, %43 : vector<8x1xf32>
    %c0_25 = arith.constant 0 : index
    %c0_26 = arith.constant 0 : index
    %c0_27 = arith.constant 0 : index
    %45 = vector.load %arg6[%c0_25, %c0_26, %c0_27] : memref<1x8x1xf32, #tpu.memory_space<vmem>>, vector<1x8x1xf32>
    %46 = vector.shape_cast %45 : vector<1x8x1xf32> to vector<8x1xf32>
    %47 = vector.shape_cast %44 : vector<8x1xf32> to vector<1x8x1xf32>
    tpu.vector_store %arg6[%c0_25, %c0_26, %c0_27], %47 {strides = array<i32>} : memref<1x8x1xf32, #tpu.memory_space<vmem>>, vector<1x8x1xf32>,
    return
  }
  func.func @transform_0(%arg0: i32, %arg1: i32) -> (i32, i32) {
    %c1_i32 = arith.constant 1 : i32
    %0 = arith.muli %arg0, %c1_i32 : i32
    %1 = arith.addi %0, %arg1 : i32
    %c0_i32 = arith.constant 0 : i32
    %c0_i32_0 = arith.constant 0 : i32
    return %c0_i32, %1 : i32, i32
  }
  func.func @transform_1(%arg0: i32, %arg1: i32) -> (i32, i32) {
    %c1_i32 = arith.constant 1 : i32
    %0 = arith.muli %arg0, %c1_i32 : i32
    %1 = arith.addi %0, %arg1 : i32
    %c0_i32 = arith.constant 0 : i32
    %c0_i32_0 = arith.constant 0 : i32
    return %c0_i32, %1 : i32, i32
  }
  func.func @transform_2(%arg0: i32, %arg1: i32) -> (i32, i32, i32) {
    %c0_i32 = arith.constant 0 : i32
    %c0_i32_0 = arith.constant 0 : i32
    %c0_i32_1 = arith.constant 0 : i32
    return %arg0, %c0_i32, %c0_i32_0 : i32, i32, i32
  }
  func.func @transform_3(%arg0: i32, %arg1: i32) -> (i32, i32, i32) {
    %c0_i32 = arith.constant 0 : i32
    %c0_i32_0 = arith.constant 0 : i32
    %c0_i32_1 = arith.constant 0 : i32
    return %arg0, %c0_i32, %c0_i32_0 : i32, i32, i32
  }
  func.func @transform_4(%arg0: i32, %arg1: i32) -> (i32, i32, i32) {
    %c0_i32 = arith.constant 0 : i32
    %c0_i32_0 = arith.constant 0 : i32
    %c0_i32_1 = arith.constant 0 : i32
    return %arg0, %c0_i32, %c0_i32_0 : i32, i32, i32
  }
}

</mosaic_0001>

<llo_original>
// kernel: tpu_custom_call.1
$region0: #{tpu_custom_call.1}
  #allocation0 [shape = 'u32[]', space=smem, size = 0x4, offset = 0x4, fixed_abs, tag = 'smem constant byte address 0x4 - core index']
  #allocation1 [shape = 'u32[72,128]{1,0:T(1,128)}', space=vmem, size = 0x9000, scoped, tag = 'internal scratch']
  %s0 = inlined_call_operand.hbm [shape: f32[8,256], index: 0, kind: input, shape index: {}]
  %s1 = inlined_call_operand.hbm [shape: f32[8,256], index: 1, kind: input, shape index: {}]
  %s2 = inlined_call_operand.vmem [shape: f32[2,8,1], index: 2, kind: output, shape index: {0}]
  %s3 = inlined_call_operand.vmem [shape: f32[2,8,1], index: 3, kind: output, shape index: {1}]
  %s4 = inlined_call_operand.vmem [shape: f32[2,8,1], index: 4, kind: output, shape index: {2}]
  %5 = xla_tuple %s2, %s3, %s4
  %s6 = sld [smem:[#allocation0]]
  $region69: #{tpu_custom_call.1} parent=0
    _
  %s8 = ssub.s32 1, %s6
  %s9 = scalar_select 0, %s8, %s6
  $region1: #{tpu_custom_call.1} parent=0
    #allocation2 [shape = 'u8[8192]{0}', space=vmem, size = 0x2000, scoped, tag = 'input window, operand 0']
    #allocation3 [shape = 's32[2]{0}', space=sflag, size = 0x8, scoped, tag = 'scoped memory for tpu_custom_call.1']
    #allocation4 [shape = 'u8[8192]{0}', space=vmem, size = 0x2000, scoped, tag = 'input window, operand 1']
    #allocation5 [shape = 's32[2]{0}', space=sflag, size = 0x8, scoped, tag = 'scoped memory for tpu_custom_call.1']
    %10 = vsyncpa [#allocation3], 0
    %s11 = scalar_lea.sflag [#allocation3], 1
    %12 = vsyncpa %s11, 0
    %13 = vsyncpa [#allocation5], 0
    %s14 = scalar_lea.sflag [#allocation5], 1
    %15 = vsyncpa %s14, 0
    loop: start=0, step=1, limit=4
    $region2: #{tpu_custom_call.1} parent=1 // loop_pre_header
      _
    $region3: #{tpu_custom_call.1} parent=1 // loop_header
      %s17 = sphi 0, %s21
      %p18 = scmp.ge.s32.totalorder %s17, 4
      %s24 = sphi 0, %s36
      %s25 = sphi 0, %s32
      %s26 = sphi 0, %s24
      %s27 = sphi 0, %s25
      %s28 = sphi 0, %s26
      %s29 = sphi 0, %s27
      %s41 = sphi 0, %s43
      %s44 = sphi 0, %s41
      %s45 = sphi 0, %s44
      %s61 = sphi 0, %s45
      %s69 = sphi 0, %s71
      %s72 = sphi 0, %s69
      %s73 = sphi 0, %s72
      %s89 = sphi 0, %s73
      %s95 = sphi 0, %s97
      %s98 = sphi 0, %s95
      %s99 = sphi 0, %s98
      %s115 = sphi 0, %s99
      %s121 = sphi 0, %s123
      %s124 = sphi 0, %s121
      %s125 = sphi 0, %s124
      %s141 = sphi 0, %s125
      %s147 = sphi 0, %s149
      %s150 = sphi 0, %s147
      %s151 = sphi 0, %s150
      %s167 = sphi 0, %s151
    $region4: #{tpu_custom_call.1} parent=1 // loop_header_branch
      %20 = sbr.rel (%p18) target = $region8
    $region5: #{tpu_custom_call.1} parent=1 // loop_body
      %s22 = ssub.s32 %s17, 1
      %s23 = ssub.s32 %s17, 2
      %s30 = sadd.s32 1, %s25
      %p31 = scmp.ge.s32.totalorder %s30, 1
      %s32 = scalar_select %p31, 0, %s30
      %s33 = sadd.s32 1, %s24
      %s34 = scalar_select %p31, %s33, %s24
      %p35 = scmp.ge.s32.totalorder %s34, 2
      %s36 = scalar_select %p35, 0, %s34
      %s37 = sadd.s32 %s24, %s25
      %s38 = sadd.s32 %s36, %s32
      %s39 = ssub.s32 %s37, %s38
      %p40 = scmp.eq.s32.totalorder %s39, 0
      %s42 = sadd.s32 %s41, 1
      %s43 = scalar_select %p40, %s41, %s42
      %p46 = pneg %p40
      %p47 = scmp.eq.s32.totalorder %s17, 1
      %p48 = por %p46, %p47
      %p49 = scmp.ne.s32.totalorder %s41, %s44
      %p50 = scmp.eq.s32.totalorder %s17, 0
      %p51 = por %p49, %p50
      %p52 = scmp.ne.s32.totalorder %s41, %s44
      %p53 = scmp.eq.s32.totalorder %s22, 1
      %p54 = por %p52, %p53
      %p55 = scmp.ne.s32.totalorder %s44, %s45
      %p56 = scmp.eq.s32.totalorder %s22, 0
      %p57 = por %p55, %p56
      %p58 = scmp.ne.s32.totalorder %s44, %s45
      %p59 = scmp.eq.s32.totalorder %s23, 1
      %p60 = por %p58, %p59
      %p62 = scmp.ne.s32.totalorder %s45, %s61
      %p63 = scmp.eq.s32.totalorder %s23, 0
      %p64 = por %p62, %p63
      %s65 = sadd.s32 %s24, %s25
      %s66 = sadd.s32 %s36, %s32
      %s67 = ssub.s32 %s65, %s66
      %p68 = scmp.eq.s32.totalorder %s67, 0
      %s70 = sadd.s32 %s69, 1
      %s71 = scalar_select %p68, %s69, %s70
      %p74 = pneg %p68
      %p75 = scmp.eq.s32.totalorder %s17, 1
      %p76 = por %p74, %p75
      %p77 = scmp.ne.s32.totalorder %s69, %s72
      %p78 = scmp.eq.s32.totalorder %s17, 0
      %p79 = por %p77, %p78
      %p80 = scmp.ne.s32.totalorder %s69, %s72
      %p81 = scmp.eq.s32.totalorder %s22, 1
      %p82 = por %p80, %p81
      %p83 = scmp.ne.s32.totalorder %s72, %s73
      %p84 = scmp.eq.s32.totalorder %s22, 0
      %p85 = por %p83, %p84
      %p86 = scmp.ne.s32.totalorder %s72, %s73
      %p87 = scmp.eq.s32.totalorder %s23, 1
      %p88 = por %p86, %p87
      %p90 = scmp.ne.s32.totalorder %s73, %s89
      %p91 = scmp.eq.s32.totalorder %s23, 0
      %p92 = por %p90, %p91
      %s93 = ssub.s32 %s24, %s36
      %p94 = scmp.eq.s32.totalorder %s93, 0
      %s96 = sadd.s32 %s95, 1
      %s97 = scalar_select %p94, %s95, %s96
      %p100 = pneg %p94
      %p101 = scmp.eq.s32.totalorder %s17, 1
      %p102 = por %p100, %p101
      %p103 = scmp.ne.s32.totalorder %s95, %s98
      %p104 = scmp.eq.s32.totalorder %s17, 0
      %p105 = por %p103, %p104
      %p106 = scmp.ne.s32.totalorder %s95, %s98
      %p107 = scmp.eq.s32.totalorder %s22, 1
      %p108 = por %p106, %p107
      %p109 = scmp.ne.s32.totalorder %s98, %s99
      %p110 = scmp.eq.s32.totalorder %s22, 0
      %p111 = por %p109, %p110
      %p112 = scmp.ne.s32.totalorder %s98, %s99
      %p113 = scmp.eq.s32.totalorder %s23, 1
      %p114 = por %p112, %p113
      %p116 = scmp.ne.s32.totalorder %s99, %s115
      %p117 = scmp.eq.s32.totalorder %s23, 0
      %p118 = por %p116, %p117
      %s119 = ssub.s32 %s24, %s36
      %p120 = scmp.eq.s32.totalorder %s119, 0
      %s122 = sadd.s32 %s121, 1
      %s123 = scalar_select %p120, %s121, %s122
      %p126 = pneg %p120
      %p127 = scmp.eq.s32.totalorder %s17, 1
      %p128 = por %p126, %p127
      %p129 = scmp.ne.s32.totalorder %s121, %s124
      %p130 = scmp.eq.s32.totalorder %s17, 0
      %p131 = por %p129, %p130
      %p132 = scmp.ne.s32.totalorder %s121, %s124
      %p133 = scmp.eq.s32.totalorder %s22, 1
      %p134 = por %p132, %p133
      %p135 = scmp.ne.s32.totalorder %s124, %s125
      %p136 = scmp.eq.s32.totalorder %s22, 0
      %p137 = por %p135, %p136
      %p138 = scmp.ne.s32.totalorder %s124, %s125
      %p139 = scmp.eq.s32.totalorder %s23, 1
      %p140 = por %p138, %p139
      %p142 = scmp.ne.s32.totalorder %s125, %s141
      %p143 = scmp.eq.s32.totalorder %s23, 0
      %p144 = por %p142, %p143
      %s145 = ssub.s32 %s24, %s36
      %p146 = scmp.eq.s32.totalorder %s145, 0
      %s148 = sadd.s32 %s147, 1
      %s149 = scalar_select %p146, %s147, %s148
      %p152 = pneg %p146
      %p153 = scmp.eq.s32.totalorder %s17, 1
      %p154 = por %p152, %p153
      %p155 = scmp.ne.s32.totalorder %s147, %s150
      %p156 = scmp.eq.s32.totalorder %s17, 0
      %p157 = por %p155, %p156
      %p158 = scmp.ne.s32.totalorder %s147, %s150
      %p159 = scmp.eq.s32.totalorder %s22, 1
      %p160 = por %p158, %p159
      %p161 = scmp.ne.s32.totalorder %s150, %s151
      %p162 = scmp.eq.s32.totalorder %s22, 0
      %p163 = por %p161, %p162
      %p164 = scmp.ne.s32.totalorder %s150, %s151
      %p165 = scmp.eq.s32.totalorder %s23, 1
      %p166 = por %p164, %p165
      %p168 = scmp.ne.s32.totalorder %s151, %s167
      %p169 = scmp.eq.s32.totalorder %s23, 0
      %p170 = por %p168, %p169
      %p171 = scmp.le.s32.totalorder 1, %s17
      %p172 = scmp.lt.s32.totalorder %s17, 3
      %p173 = pnand %p171, %p172
      %p174 = pneg %p173
      // Predicated region
      $region9: #{tpu_custom_call.1} parent=5 // pred_check
        _
      $region10: #{tpu_custom_call.1} parent=5 // pred_check_branch
        %176 = sbr.rel (%p173) target = $region12
      $region11: #{tpu_custom_call.1} parent=5 // pred_region
        %s177 = ssub.s32 %s17, 1
      $region12: #{tpu_custom_call.1} parent=5 // pred_fallthru
        _
      %p178 = scmp.lt.s32.totalorder %s17, 2
      // Predicated region
      $region13: #{tpu_custom_call.1} parent=5 // pred_check
        %p179 = pneg %p178
      $region14: #{tpu_custom_call.1} parent=5 // pred_check_branch
        %181 = sbr.rel (%p179) target = $region16
      $region15: #{tpu_custom_call.1} parent=5 // pred_region
        // Predicated region
        $region17: #{tpu_custom_call.1} parent=15 // pred_check
          %p182 = pneg %p51
        $region18: #{tpu_custom_call.1} parent=15 // pred_check_branch
          %184 = sbr.rel (%p182) target = $region20
        $region19: #{tpu_custom_call.1} parent=15 // pred_region
          %s185 = sand.u32 %s41, 1
          %s186 = scalar_lea.sflag [#allocation3], %s185
          %s187 = sand.u32 %s41, 1
          %s188 = smul.addr %s187, 8
          %s189 = scalar_lea.vmem [#allocation2], %s188
          %s190 = sadd.s32 %s24, %s25
          %192 = vsyncadd %s186, 0
          %s193 = smul.addr %s190, 8
          %s194 = scalar_lea.hbm %s0, %s193
          %s196 = sshll.u32 %s194, 4
          %s197 = int_to_ptr.hbm [resolvable:$true] %s196
          %s198 = sshll.u32 %s189, 4
          %s199 = int_to_ptr.vmem [resolvable:$true] %s198
          %201 = dma.hbm_to_vmem [thread:$0]  %s197, 128, %s199, %s186
        $region20: #{tpu_custom_call.1} parent=15 // pred_fallthru
          _
        // Predicated region
        $region21: #{tpu_custom_call.1} parent=15 // pred_check
          %p202 = pneg %p79
        $region22: #{tpu_custom_call.1} parent=15 // pred_check_branch
          %204 = sbr.rel (%p202) target = $region24
        $region23: #{tpu_custom_call.1} parent=15 // pred_region
          %s205 = sand.u32 %s69, 1
          %s206 = scalar_lea.sflag [#allocation5], %s205
          %s207 = sand.u32 %s69, 1
          %s208 = smul.addr %s207, 8
          %s209 = scalar_lea.vmem [#allocation4], %s208
          %s210 = sadd.s32 %s24, %s25
          %212 = vsyncadd %s206, 0
          %s213 = smul.addr %s210, 8
          %s214 = scalar_lea.hbm %s1, %s213
          %s216 = sshll.u32 %s214, 4
          %s217 = int_to_ptr.hbm [resolvable:$true] %s216
          %s218 = sshll.u32 %s209, 4
          %s219 = int_to_ptr.vmem [resolvable:$true] %s218
          %221 = dma.hbm_to_vmem [thread:$0]  %s217, 128, %s219, %s206
        $region24: #{tpu_custom_call.1} parent=15 // pred_fallthru
          _
      $region16: #{tpu_custom_call.1} parent=5 // pred_fallthru
        _
      %p222 = scmp.le.s32.totalorder 1, %s17
      %p223 = scmp.lt.s32.totalorder %s17, 3
      %p224 = pnand %p222, %p223
      %p225 = pneg %p224
      // Predicated region
      $region25: #{tpu_custom_call.1} parent=5 // pred_check
        _
      $region26: #{tpu_custom_call.1} parent=5 // pred_check_branch
        %227 = sbr.rel (%p224) target = $region28
      $region27: #{tpu_custom_call.1} parent=5 // pred_region
        %s228 = ssub.s32 %s17, 1
        %s229 = sand.u32 %s44, 1
        %s230 = scalar_lea.sflag [#allocation3], %s229
        %s231 = sand.u32 %s44, 1
        %s232 = smul.addr %s231, 8
        %s233 = scalar_lea.vmem [#allocation2], %s232
        // Predicated region
        $region29: #{tpu_custom_call.1} parent=27 // pred_check
          %p234 = pneg %p57
        $region30: #{tpu_custom_call.1} parent=27 // pred_check_branch
          %236 = sbr.rel (%p234) target = $region32
        $region31: #{tpu_custom_call.1} parent=27 // pred_region
          %238 = dma.done %s230, 128
        $region32: #{tpu_custom_call.1} parent=27 // pred_fallthru
          _
        %s239 = sand.u32 %s72, 1
        %s240 = scalar_lea.sflag [#allocation5], %s239
        %s241 = sand.u32 %s72, 1
        %s242 = smul.addr %s241, 8
        %s243 = scalar_lea.vmem [#allocation4], %s242
        // Predicated region
        $region33: #{tpu_custom_call.1} parent=27 // pred_check
          %p244 = pneg %p85
        $region34: #{tpu_custom_call.1} parent=27 // pred_check_branch
          %246 = sbr.rel (%p244) target = $region36
        $region35: #{tpu_custom_call.1} parent=27 // pred_region
          %248 = dma.done %s240, 128
        $region36: #{tpu_custom_call.1} parent=27 // pred_fallthru
          _
        %s249 = sand.u32 %s44, 1
        %s250 = scalar_lea.sflag [#allocation3], %s249
        %s251 = sand.u32 %s44, 1
        %s252 = smul.addr %s251, 8
        %s253 = scalar_lea.vmem [#allocation2], %s252
        %p254 = pneg %p57
        %p255 = pneg %p54
        %s256 = sand.u32 %s72, 1
        %s257 = scalar_lea.sflag [#allocation5], %s256
        %s258 = sand.u32 %s72, 1
        %s259 = smul.addr %s258, 8
        %s260 = scalar_lea.vmem [#allocation4], %s259
        %p261 = pneg %p85
        %p262 = pneg %p82
        %p263 = pneg %p111
        %p264 = pneg %p108
        %p265 = scmp.lt.s32.totalorder %s26, 1
        %s266 = scalar_select %p265, %s26, 1
        %s267 = smul.addr %s266, 8
        %s268 = scalar_lea.vmem %s2, %s267
        %p269 = pneg %p137
        %p270 = pneg %p134
        %p271 = scmp.lt.s32.totalorder %s26, 1
        %s272 = scalar_select %p271, %s26, 1
        %s273 = smul.addr %s272, 8
        %s274 = scalar_lea.vmem %s3, %s273
        %p275 = pneg %p163
        %p276 = pneg %p160
        %p277 = scmp.lt.s32.totalorder %s26, 1
        %s278 = scalar_select %p277, %s26, 1
        %s279 = smul.addr %s278, 8
        %s280 = scalar_lea.vmem %s4, %s279
        %s281 = sadd.s32 %s26, %s27
        %s282 = sadd.s32 %s26, %s27
        %p283 = scmp.lt.s32.totalorder %s26, 1
        %s284 = scalar_select %p283, %s26, 1
        %s285 = smul.addr %s284, 8
        %s286 = scalar_lea.vmem %s2, %s285
        %p287 = scmp.lt.s32.totalorder %s26, 1
        %s288 = scalar_select %p287, %s26, 1
        %s289 = smul.addr %s288, 8
        %s290 = scalar_lea.vmem %s3, %s289
        %p291 = scmp.lt.s32.totalorder %s26, 1
        %s292 = scalar_select %p291, %s26, 1
        %s293 = smul.addr %s292, 8
        %s294 = scalar_lea.vmem %s4, %s293
        %p295 = scmp.eq.s32.totalorder %s27, 0
        // Predicated region
        $region37: #{tpu_custom_call.1} parent=27 // pred_check
          %p296 = pneg %p295
        $region38: #{tpu_custom_call.1} parent=27 // pred_check_branch
          %298 = sbr.rel (%p296) target = $region40
        $region39: #{tpu_custom_call.1} parent=27 // pred_region
          %vm299 = vcmask 7168
          %300 = vst.msk [vmem:[%s286] sm:$0xff] %vm299, 0.0
          %301 = vst.msk [vmem:[%s290] sm:$0xff] %vm299, 0.0
          %302 = vst.msk [vmem:[%s294] sm:$0xff] %vm299, 0.0
        $region40: #{tpu_custom_call.1} parent=27 // pred_fallthru
          _
        %v303 = vld [vmem:[%s233] sm:$0xff]
        %v304 = vld [vmem:[%s243] sm:$0xff]
        %v305 = vand.u32 2147483647, %v303
        %v306 = vsub.f32 0.0, %v305
        %v307 = vmul.f32 %v306, 1.442695
        %v308 = vpow.pop %v307
        %v309 = vadd.f32 %v308, 1.0
        %v310 = vrcp.pop %v309
        %vm311 = vcmp.ge.f32.partialorder %v303, 0.0
        %v312 = vmul.f32 %v308, %v310
        %v313 = vsel %vm311, %v310, %v312
        %v314 = vmax.f32 %v303, 0.0
        %v315 = vmul.f32 %v303, %v304
        %v316 = vsub.f32 %v314, %v315
        %v317 = vadd.f32 %v308, 1.0
        %v318 = vlog2.pop %v317
        %v319 = vmul.f32 %v318, 0.6931472
        %v320 = vmul.f32 -0.5, %v308
        %v321 = vadd.f32 %v320, 1.0
        %v322 = vmul.f32 %v321, %v308
        %v323 = vand.u32 2147483647, %v308
        %vm324 = vcmp.lt.f32.partialorder %v323, 0.0004427343
        %v325 = vsel %vm324, %v322, %v319
        %v326 = vadd.f32 %v316, %v325
        %v327 = vld [vmem:[%s286] sm:$0xff]
        %v328 = vmul.f32 %v313, %v304
        %329 = vadd.xlane.f32.xlu0 %v328
        %v330 = vpop.xlane.xlu0 %329
        %v331 = vadd.f32 %v327, %v330
        %vm332 = vcmask 7168
        %333 = vst.msk [vmem:[%s286] sm:$0xff] %vm332, %v331
        %v334 = vld [vmem:[%s290] sm:$0xff]
        %v335 = vadd.f32 %v313, %v304
        %336 = vadd.xlane.f32.xlu0 %v335
        %v337 = vpop.xlane.xlu0 %336
        %v338 = vadd.f32 %v334, %v337
        %339 = vst.msk [vmem:[%s290] sm:$0xff] %vm332, %v338
        %v340 = vld [vmem:[%s294] sm:$0xff]
        %341 = vadd.xlane.f32.xlu0 %v326
        %v342 = vpop.xlane.xlu0 %341
        %v343 = vadd.f32 %v340, %v342
        %344 = vst.msk [vmem:[%s294] sm:$0xff] %vm332, %v343
        %p345 = scmp.lt.s32.totalorder %s26, 1
        %s346 = scalar_select %p345, %s26, 1
        %s347 = smul.addr %s346, 8
        %s348 = scalar_lea.vmem %s2, %s347
        %p349 = scmp.lt.s32.totalorder %s26, 1
        %s350 = scalar_select %p349, %s26, 1
        %s351 = smul.addr %s350, 8
        %s352 = scalar_lea.vmem %s3, %s351
        %p353 = scmp.lt.s32.totalorder %s26, 1
        %s354 = scalar_select %p353, %s26, 1
        %s355 = smul.addr %s354, 8
        %s356 = scalar_lea.vmem %s4, %s355
        // Predicated region
        $region41: #{tpu_custom_call.1} parent=27 // pred_check
          %p357 = pneg %p108
        $region42: #{tpu_custom_call.1} parent=27 // pred_check_branch
          %359 = sbr.rel (%p357) target = $region44
        $region43: #{tpu_custom_call.1} parent=27 // pred_region
          _
        $region44: #{tpu_custom_call.1} parent=27 // pred_fallthru
          _
        // Predicated region
        $region45: #{tpu_custom_call.1} parent=27 // pred_check
          %p360 = pneg %p134
        $region46: #{tpu_custom_call.1} parent=27 // pred_check_branch
          %362 = sbr.rel (%p360) target = $region48
        $region47: #{tpu_custom_call.1} parent=27 // pred_region
          _
        $region48: #{tpu_custom_call.1} parent=27 // pred_fallthru
          _
        // Predicated region
        $region49: #{tpu_custom_call.1} parent=27 // pred_check
          %p363 = pneg %p160
        $region50: #{tpu_custom_call.1} parent=27 // pred_check_branch
          %365 = sbr.rel (%p363) target = $region52
        $region51: #{tpu_custom_call.1} parent=27 // pred_region
          _
        $region52: #{tpu_custom_call.1} parent=27 // pred_fallthru
          _
      $region28: #{tpu_custom_call.1} parent=5 // pred_fallthru
        _
      %p366 = scmp.le.s32.totalorder 2, %s17
      // Predicated region
      $region53: #{tpu_custom_call.1} parent=5 // pred_check
        %p367 = pneg %p366
      $region54: #{tpu_custom_call.1} parent=5 // pred_check_branch
        %369 = sbr.rel (%p367) target = $region56
      $region55: #{tpu_custom_call.1} parent=5 // pred_region
        %s370 = ssub.s32 %s17, 2
        // Predicated region
        $region57: #{tpu_custom_call.1} parent=55 // pred_check
          %p371 = pneg %p114
        $region58: #{tpu_custom_call.1} parent=55 // pred_check_branch
          %373 = sbr.rel (%p371) target = $region60
        $region59: #{tpu_custom_call.1} parent=55 // pred_region
          %p374 = scmp.lt.s32.totalorder %s28, 1
          %s375 = scalar_select %p374, %s28, 1
          %s376 = smul.addr %s375, 8
          %s377 = scalar_lea.vmem %s2, %s376
        $region60: #{tpu_custom_call.1} parent=55 // pred_fallthru
          _
        // Predicated region
        $region61: #{tpu_custom_call.1} parent=55 // pred_check
          %p378 = pneg %p140
        $region62: #{tpu_custom_call.1} parent=55 // pred_check_branch
          %380 = sbr.rel (%p378) target = $region64
        $region63: #{tpu_custom_call.1} parent=55 // pred_region
          %p381 = scmp.lt.s32.totalorder %s28, 1
          %s382 = scalar_select %p381, %s28, 1
          %s383 = smul.addr %s382, 8
          %s384 = scalar_lea.vmem %s3, %s383
        $region64: #{tpu_custom_call.1} parent=55 // pred_fallthru
          _
        // Predicated region
        $region65: #{tpu_custom_call.1} parent=55 // pred_check
          %p385 = pneg %p166
        $region66: #{tpu_custom_call.1} parent=55 // pred_check_branch
          %387 = sbr.rel (%p385) target = $region68
        $region67: #{tpu_custom_call.1} parent=55 // pred_region
          %p388 = scmp.lt.s32.totalorder %s28, 1
          %s389 = scalar_select %p388, %s28, 1
          %s390 = smul.addr %s389, 8
          %s391 = scalar_lea.vmem %s4, %s390
        $region68: #{tpu_custom_call.1} parent=55 // pred_fallthru
          _
      $region56: #{tpu_custom_call.1} parent=5 // pred_fallthru
        _
    $region6: #{tpu_custom_call.1} parent=1 // loop_footer
      %s21 = sadd.s32 1, %s17
    $region7: #{tpu_custom_call.1} parent=1 // loop_footer_branch
      %16 = sbr.rel target = $region3
    $region8: #{tpu_custom_call.1} parent=1 // loop_exit
      _
    %392 = vsyncpa [#allocation3], 1
    %s393 = scalar_lea.sflag [#allocation3], 1
    %394 = vsyncpa %s393, 1
    %395 = vsyncpa [#allocation5], 1
    %s396 = scalar_lea.sflag [#allocation5], 1
    %397 = vsyncpa %s396, 1

</llo_original>
